<compile_context>
chip_gen: v7x
topology: tpu7x:2x2x1
jax: 0.10.0
libtpu: 0.0.40
codegen_flags: <defaults>
</compile_context>

<pallas_src>
import functools
import numpy as np
import jax
import jax.numpy as jnp
from jax.experimental import pallas as pl
from jax.experimental.pallas import tpu as pltpu


def cnn_detect_kernel(xin_ref, wc_ref, bc_ref, w1_ref, b1_ref, w2_ref, b2_ref, out_ref):
    xin = xin_ref[...]                                            # (bt, Cin*L)  bf16
    # Conv1d(k=3, p=1) as one fused Toeplitz matmul; columns = [even positions | odd positions].
    conv = jnp.dot(xin, wc_ref[...], preferred_element_type=jnp.float32)   # (bt, 2*Cout*Lh) f32
    half = conv.shape[1] // 2
    bc = bc_ref[...]                                              # (1, Cout*Lh) f32
    conv_e = jnp.maximum(conv[:, :half] + bc, 0.0)                # bias + ReLU (even positions)
    conv_o = jnp.maximum(conv[:, half:] + bc, 0.0)                # bias + ReLU (odd positions)
    pooled = jnp.maximum(conv_e, conv_o)                          # MaxPool1d(2,2); flat index o*Lh+t
    # fc1 + ReLU (output lanes zero-padded to 128 -> padded columns stay exactly 0)
    h = jnp.dot(pooled.astype(w1_ref.dtype), w1_ref[...],
                preferred_element_type=jnp.float32) + b1_ref[...]
    h = jnp.maximum(h, 0.0)
    # fc2 (lane-dense (bt, 128) store; real Cout columns sliced in the wrapper)
    out_ref[...] = jnp.dot(h.astype(w2_ref.dtype), w2_ref[...],
                           preferred_element_type=jnp.float32) + b2_ref[...]


def _round_up(n, m):
    return ((n + m - 1) // m) * m


def build_fused_conv_weight(conv_w, L):
    """Toeplitz-expand Conv1d weights (Cout, Cin, 3) into ONE (Cin*L, 2*Cout*Lh) matrix.
    Columns: [even output positions | odd output positions]; each half laid out o*Lh + t
    (PyTorch flatten order)."""
    w = np.asarray(conv_w, dtype=np.float32)
    Cout, Cin, K = w.shape
    Lh = L // 2
    W = np.zeros((Cin, L, 2, Cout, Lh), dtype=np.float32)
    t = np.arange(Lh)
    for parity in (0, 1):
        for k in range(K):
            m = 2 * t + parity + (k - 1)              # padding = 1
            valid = (m >= 0) & (m < L)
            mv, tv = m[valid], t[valid]
            for o in range(Cout):
                for c in range(Cin):
                    W[c, mv, parity, o, tv] = w[o, c, k]
    # TODO(synk): for non-toy L replace the Toeplitz expansion (density 3/L, O(L^2) bytes)
    # with three shifted (Cin, Cout) matmuls to save MXU FLOPs and VMEM (v7x has only 64 MiB).
    return W.reshape(Cin * L, 2 * Cout * Lh)


def prepare_params(conv_w, conv_b, fc1_w, fc1_b, fc2_w, fc2_b, L):
    """Build all device-side weight slabs ONCE: bf16 matmul operands, f32 biases,
    fc N-dims zero-padded to multiples of 128 for lane-dense unmasked stores."""
    Cout, Cin, _ = conv_w.shape
    Lh = L // 2
    window = int(fc1_w.shape[0])

    wc = jnp.asarray(build_fused_conv_weight(conv_w, L), jnp.bfloat16)       # (Cin*L, 2*Cout*Lh)
    bc = jnp.repeat(jnp.asarray(conv_b, jnp.float32), Lh).reshape(1, Cout * Lh)

    np1 = _round_up(window, 128)      # fc1 output lanes
    np2 = _round_up(Cout, 128)        # fc2 output lanes
    w1t = np.zeros((Cout * Lh, np1), np.float32)
    w1t[:, :window] = np.asarray(fc1_w, np.float32).T
    b1 = np.zeros((1, np1), np.float32)
    b1[0, :window] = np.asarray(fc1_b, np.float32)
    w2t = np.zeros((np1, np2), np.float32)
    w2t[:window, :Cout] = np.asarray(fc2_w, np.float32).T
    b2 = np.zeros((1, np2), np.float32)
    b2[0, :Cout] = np.asarray(fc2_b, np.float32)

    return (wc, bc,
            jnp.asarray(w1t, jnp.bfloat16), jnp.asarray(b1),
            jnp.asarray(w2t, jnp.bfloat16), jnp.asarray(b2))


@functools.partial(jax.jit, static_argnames=("cout", "bt"))
def cnn_forward(x, params, *, cout, bt=128):
    wc, bc, w1t, b1, w2t, b2 = params
    B, Cin, L = x.shape
    xin = x.reshape(B, Cin * L).astype(jnp.bfloat16)

    # Batch tiling: one full-batch block if it fits, otherwise 8-aligned tiles (pad batch).
    if B <= bt:
        bt_eff, Bp = B, B
    else:
        bt_eff = max(8, (bt // 8) * 8)
        Bp = _round_up(B, bt_eff)
        if Bp != B:
            xin = jnp.pad(xin, ((0, Bp - B), (0, 0)))

    np2 = w2t.shape[1]
    out = pl.pallas_call(
        cnn_detect_kernel,
        out_shape=jax.ShapeDtypeStruct((Bp, np2), jnp.float32),
        grid=(Bp // bt_eff,),
        in_specs=[
            pl.BlockSpec((bt_eff, xin.shape[1]), lambda i: (i, 0)),   # x: batch-tiled
            # Weights: constant index_map -> same block every step, no re-DMA across the grid.
            # (At these sizes the default double-buffer VMEM cost is negligible; use
            #  pl.Buffered(1) / vmem_limit_bytes when scaling the weights up.)
            pl.BlockSpec(wc.shape, lambda i: (0, 0)),
            pl.BlockSpec(bc.shape, lambda i: (0, 0)),
            pl.BlockSpec(w1t.shape, lambda i: (0, 0)),
            pl.BlockSpec(b1.shape, lambda i: (0, 0)),
            pl.BlockSpec(w2t.shape, lambda i: (0, 0)),
            pl.BlockSpec(b2.shape, lambda i: (0, 0)),
        ],
        out_specs=pl.BlockSpec((bt_eff, np2), lambda i: (i, 0)),      # lane-dense (bt, 128) store
        compiler_params=pltpu.CompilerParams(
            dimension_semantics=("parallel",)),                       # shard batch across TCs (v7x)
    )(xin, wc, bc, w1t, b1, w2t, b2)
    return out[:B, :cout]


def reference_forward(x, conv_w, conv_b, fc1_w, fc1_b, fc2_w, fc2_b, emulate_bf16=False):
    """Pure-JAX reference mirroring the PyTorch forward. With emulate_bf16=True, matmul
    operands are rounded to bf16 at the same points as the kernel (accumulation stays f32)."""
    cast = ((lambda a: a.astype(jnp.bfloat16).astype(jnp.float32))
            if emulate_bf16 else (lambda a: a))
    hi = jax.lax.Precision.HIGHEST
    x = cast(x.astype(jnp.float32))
    cw = cast(conv_w.astype(jnp.float32))
    B, Cin, L = x.shape
    Cout = cw.shape[0]
    xpad = jnp.pad(x, ((0, 0), (0, 0), (1, 1)))
    cols = jnp.stack([xpad[:, :, k:k + L] for k in range(3)], axis=-1)    # (B, Cin, L, 3)
    conv = jnp.einsum('bclk,ock->bol', cols, cw, precision=hi) + conv_b[None, :, None]
    conv = jnp.maximum(conv, 0.0)
    pooled = jnp.maximum(conv[:, :, 0::2], conv[:, :, 1::2])              # (B, Cout, L//2)
    flat = cast(pooled.reshape(B, Cout * (L // 2)))
    h = jnp.maximum(jnp.dot(flat, cast(fc1_w.astype(jnp.float32)).T, precision=hi) + fc1_b, 0.0)
    h = cast(h)
    return jnp.dot(h, cast(fc2_w.astype(jnp.float32)).T, precision=hi) + fc2_b


if __name__ == "__main__":
    # Small shapes consistent with the module (window_size == sequence length).
    B, in_channels, out_channels, window_size = 16, 4, 8, 16

    key = jax.random.PRNGKey(0)
    keys = jax.random.split(key, 7)

    def uinit(k, shape, fan_in):
        bound = 1.0 / np.sqrt(fan_in)
        return jax.random.uniform(k, shape, jnp.float32, -bound, bound)

    x = jax.random.normal(keys[0], (B, in_channels, window_size), jnp.float32)

    conv_w = uinit(keys[1], (out_channels, in_channels, 3), in_channels * 3)
    conv_b = uinit(keys[2], (out_channels,), in_channels * 3)
    fc1_in = window_size * out_channels // 2
    fc1_w = uinit(keys[3], (window_size, fc1_in), fc1_in)
    fc1_b = uinit(keys[4], (window_size,), fc1_in)
    fc2_w = uinit(keys[5], (out_channels, window_size), window_size)
    fc2_b = uinit(keys[6], (out_channels,), window_size)

    params = prepare_params(conv_w, conv_b, fc1_w, fc1_b, fc2_w, fc2_b, window_size)

    # bt=8 exercises a multi-step batch grid (grid=(2,)) even at this toy batch size.
    out = cnn_forward(x, params, cout=out_channels, bt=8)
    out = jax.block_until_ready(out)
    assert out.shape == (B, out_channels)

    # Tight check against a reference that rounds matmul operands to bf16 at the same points.
    ref_bf16 = reference_forward(x, conv_w, conv_b, fc1_w, fc1_b, fc2_w, fc2_b,
                                 emulate_bf16=True)
    np.testing.assert_allclose(np.asarray(out), np.asarray(ref_bf16), rtol=2e-3, atol=2e-3)
    # Loose semantic check against the pure-f32 reference.
    ref_f32 = reference_forward(x, conv_w, conv_b, fc1_w, fc1_b, fc2_w, fc2_b)
    np.testing.assert_allclose(np.asarray(out), np.asarray(ref_f32), rtol=5e-2, atol=5e-2)

    print("KERNEL_OK")
</pallas_src>

<mosaic_0001>
module attributes {stable_mosaic.version = 11 : i64} {
  func.func @cnn_detect_kernel(%arg0: i32, %arg1: memref<8x64xbf16, #tpu.memory_space<vmem>>, %arg2: memref<64x128xbf16, #tpu.memory_space<vmem>>, %arg3: memref<1x64xf32, #tpu.memory_space<vmem>>, %arg4: memref<64x128xbf16, #tpu.memory_space<vmem>>, %arg5: memref<1x128xf32, #tpu.memory_space<vmem>>, %arg6: memref<128x128xbf16, #tpu.memory_space<vmem>>, %arg7: memref<1x128xf32, #tpu.memory_space<vmem>>, %arg8: memref<8x128xf32, #tpu.memory_space<vmem>>) attributes {dimension_semantics = [#tpu.dimension_semantics<parallel>], iteration_bounds = array<i64: 2>, scalar_prefetch = 0 : i64, scratch_operands = 0 : i64, tpu.core_type = #tpu.core_type<tc>, window_params = [{transform_indices = @transform_0, window_bounds = array<i64: 8, 64>}, {pipeline_mode = #tpu.pipeline_mode<synchronous>, transform_indices = @transform_1, window_bounds = array<i64: 64, 128>}, {pipeline_mode = #tpu.pipeline_mode<synchronous>, transform_indices = @transform_2, window_bounds = array<i64: 1, 64>}, {pipeline_mode = #tpu.pipeline_mode<synchronous>, transform_indices = @transform_3, window_bounds = array<i64: 64, 128>}, {pipeline_mode = #tpu.pipeline_mode<synchronous>, transform_indices = @transform_4, window_bounds = array<i64: 1, 128>}, {pipeline_mode = #tpu.pipeline_mode<synchronous>, transform_indices = @transform_5, window_bounds = array<i64: 128, 128>}, {pipeline_mode = #tpu.pipeline_mode<synchronous>, transform_indices = @transform_6, window_bounds = array<i64: 1, 128>}, {transform_indices = @transform_7, window_bounds = array<i64: 8, 128>}]} {
    %c0 = arith.constant 0 : index
    %c0_0 = arith.constant 0 : index
    %0 = vector.load %arg1[%c0, %c0_0] : memref<8x64xbf16, #tpu.memory_space<vmem>>, vector<8x64xbf16>
    %c0_1 = arith.constant 0 : index
    %c0_2 = arith.constant 0 : index
    %1 = vector.load %arg2[%c0_1, %c0_2] : memref<64x128xbf16, #tpu.memory_space<vmem>>, vector<64x128xbf16>
    %cst = arith.constant dense<0.000000e+00> : vector<8x128xf32>
    %2 = tpu.matmul %0, %1, %cst {dimension_numbers = #tpu.dot_dimension_numbers<[1], [0], [0], [1], [0, 0, 1, 1], [], []>} : vector<8x64xbf16>, vector<64x128xbf16>, vector<8x128xf32> -> vector<8x128xf32>
    %c0_3 = arith.constant 0 : index
    %c0_4 = arith.constant 0 : index
    %3 = vector.load %arg3[%c0_3, %c0_4] : memref<1x64xf32, #tpu.memory_space<vmem>>, vector<1x64xf32>
    %4 = vector.extract_strided_slice %2 {offsets = [0, 0], sizes = [8, 64], strides = [1, 1]} : vector<8x128xf32> to vector<8x64xf32>
    %5 = vector.broadcast %3 : vector<1x64xf32> to vector<8x64xf32>
    %6 = arith.addf %4, %5 : vector<8x64xf32>
    %cst_5 = arith.constant 0.000000e+00 : f32
    %7 = vector.broadcast %cst_5 : f32 to vector<8x64xf32>
    %8 = arith.maximumf %6, %7 : vector<8x64xf32>
    %9 = vector.extract_strided_slice %2 {offsets = [0, 64], sizes = [8, 64], strides = [1, 1]} : vector<8x128xf32> to vector<8x64xf32>
    %10 = vector.broadcast %3 : vector<1x64xf32> to vector<8x64xf32>
    %11 = arith.addf %9, %10 : vector<8x64xf32>
    %cst_6 = arith.constant 0.000000e+00 : f32
    %12 = vector.broadcast %cst_6 : f32 to vector<8x64xf32>
    %13 = arith.maximumf %11, %12 : vector<8x64xf32>
    %14 = arith.maximumf %8, %13 : vector<8x64xf32>
    %15 = arith.truncf %14 : vector<8x64xf32> to vector<8x64xbf16>
    %c0_7 = arith.constant 0 : index
    %c0_8 = arith.constant 0 : index
    %16 = vector.load %arg4[%c0_7, %c0_8] : memref<64x128xbf16, #tpu.memory_space<vmem>>, vector<64x128xbf16>
    %cst_9 = arith.constant dense<0.000000e+00> : vector<8x128xf32>
    %17 = tpu.matmul %15, %16, %cst_9 {dimension_numbers = #tpu.dot_dimension_numbers<[1], [0], [0], [1], [0, 0, 1, 1], [], []>} : vector<8x64xbf16>, vector<64x128xbf16>, vector<8x128xf32> -> vector<8x128xf32>
    %c0_10 = arith.constant 0 : index
    %c0_11 = arith.constant 0 : index
    %18 = vector.load %arg5[%c0_10, %c0_11] : memref<1x128xf32, #tpu.memory_space<vmem>>, vector<1x128xf32>
    %19 = vector.broadcast %18 : vector<1x128xf32> to vector<8x128xf32>
    %20 = arith.addf %17, %19 : vector<8x128xf32>
    %cst_12 = arith.constant 0.000000e+00 : f32
    %21 = vector.broadcast %cst_12 : f32 to vector<8x128xf32>
    %22 = arith.maximumf %20, %21 : vector<8x128xf32>
    %23 = arith.truncf %22 : vector<8x128xf32> to vector<8x128xbf16>
    %c0_13 = arith.constant 0 : index
    %c0_14 = arith.constant 0 : index
    %24 = vector.load %arg6[%c0_13, %c0_14] : memref<128x128xbf16, #tpu.memory_space<vmem>>, vector<128x128xbf16>
    %cst_15 = arith.constant dense<0.000000e+00> : vector<8x128xf32>
    %25 = tpu.matmul %23, %24, %cst_15 {dimension_numbers = #tpu.dot_dimension_numbers<[1], [0], [0], [1], [0, 0, 1, 1], [], []>} : vector<8x128xbf16>, vector<128x128xbf16>, vector<8x128xf32> -> vector<8x128xf32>
    %c0_16 = arith.constant 0 : index
    %c0_17 = arith.constant 0 : index
    %26 = vector.load %arg7[%c0_16, %c0_17] : memref<1x128xf32, #tpu.memory_space<vmem>>, vector<1x128xf32>
    %27 = vector.broadcast %26 : vector<1x128xf32> to vector<8x128xf32>
    %28 = arith.addf %25, %27 : vector<8x128xf32>
    %c0_18 = arith.constant 0 : index
    %c0_19 = arith.constant 0 : index
    %29 = vector.load %arg8[%c0_18, %c0_19] : memref<8x128xf32, #tpu.memory_space<vmem>>, vector<8x128xf32>
    tpu.vector_store %arg8[%c0_18, %c0_19], %28 {strides = array<i32>} : memref<8x128xf32, #tpu.memory_space<vmem>>, vector<8x128xf32>,
    return
  }
  func.func @transform_0(%arg0: i32) -> (i32, i32) {
    %c0_i32 = arith.constant 0 : i32
    %c0_i32_0 = arith.constant 0 : i32
    return %arg0, %c0_i32 : i32, i32
  }
  func.func @transform_1(%arg0: i32) -> (i32, i32) {
    %c0_i32 = arith.constant 0 : i32
    %c0_i32_0 = arith.constant 0 : i32
    %c0_i32_1 = arith.constant 0 : i32
    return %c0_i32, %c0_i32_0 : i32, i32
  }
  func.func @transform_2(%arg0: i32) -> (i32, i32) {
    %c0_i32 = arith.constant 0 : i32
    %c0_i32_0 = arith.constant 0 : i32
    %c0_i32_1 = arith.constant 0 : i32
    return %c0_i32, %c0_i32_0 : i32, i32
  }
  func.func @transform_3(%arg0: i32) -> (i32, i32) {
    %c0_i32 = arith.constant 0 : i32
    %c0_i32_0 = arith.constant 0 : i32
    %c0_i32_1 = arith.constant 0 : i32
    return %c0_i32, %c0_i32_0 : i32, i32
  }
  func.func @transform_4(%arg0: i32) -> (i32, i32) {
    %c0_i32 = arith.constant 0 : i32
    %c0_i32_0 = arith.constant 0 : i32
    %c0_i32_1 = arith.constant 0 : i32
    return %c0_i32, %c0_i32_0 : i32, i32
  }
  func.func @transform_5(%arg0: i32) -> (i32, i32) {
    %c0_i32 = arith.constant 0 : i32
    %c0_i32_0 = arith.constant 0 : i32
    %c0_i32_1 = arith.constant 0 : i32
    return %c0_i32, %c0_i32_0 : i32, i32
  }
  func.func @transform_6(%arg0: i32) -> (i32, i32) {
    %c0_i32 = arith.constant 0 : i32
    %c0_i32_0 = arith.constant 0 : i32
    %c0_i32_1 = arith.constant 0 : i32
    return %c0_i32, %c0_i32_0 : i32, i32
  }
  func.func @transform_7(%arg0: i32) -> (i32, i32) {
    %c0_i32 = arith.constant 0 : i32
    %c0_i32_0 = arith.constant 0 : i32
    return %arg0, %c0_i32 : i32, i32
  }
}

</mosaic_0001>

<llo_original>
// kernel: cnn_forward.1
$region0: #{cnn_forward.1}
  #allocation0 [shape = 'u32[]', space=smem, size = 0x4, offset = 0x4, fixed_abs, tag = 'smem constant byte address 0x4 - core index']
  #allocation1 [shape = 'u32[144,128]{1,0:T(1,128)}', space=vmem, size = 0x12000, scoped, tag = 'internal scratch']
  %s0 = inlined_call_operand.vmem [shape: bf16[16,64], index: 0, kind: input, shape index: {}]
  %s1 = inlined_call_operand.vmem [shape: bf16[64,128], index: 1, kind: input, shape index: {}]
  %s2 = inlined_call_operand.vmem [shape: f32[1,64], index: 2, kind: input, shape index: {}]
  %s3 = inlined_call_operand.vmem [shape: bf16[64,128], index: 3, kind: input, shape index: {}]
  %s4 = inlined_call_operand.vmem [shape: f32[1,128], index: 4, kind: input, shape index: {}]
  %s5 = inlined_call_operand.vmem [shape: bf16[128,128], index: 5, kind: input, shape index: {}]
  %s6 = inlined_call_operand.vmem [shape: f32[1,128], index: 6, kind: input, shape index: {}]
  %s7 = inlined_call_operand.vmem [shape: f32[16,128], index: 7, kind: output, shape index: {}]
  %s8 = sld [smem:[#allocation0]]
  $region61: #{cnn_forward.1} parent=0
    _
  %s10 = ssub.s32 1, %s8
  %s11 = scalar_select 0, %s10, %s8
  loop: start=0, step=1, limit=4
  $region2: #{cnn_forward.1} parent=0 // loop_pre_header
    _
  $region3: #{cnn_forward.1} parent=0 // loop_header
    %s13 = sphi 0, %s17
    %p14 = scmp.ge.s32.totalorder %s13, 4
    %s23 = sphi 0, %s25
    %s26 = sphi 0, %s23
    %s27 = sphi 0, %s26
    %s43 = sphi 0, %s27
    %s47 = sphi 0, %s47
    %s49 = sphi 0, %s47
    %s50 = sphi 0, %s49
    %s64 = sphi 0, %s50
    %s68 = sphi 0, %s68
    %s70 = sphi 0, %s68
    %s71 = sphi 0, %s70
    %s85 = sphi 0, %s71
    %s89 = sphi 0, %s89
    %s91 = sphi 0, %s89
    %s92 = sphi 0, %s91
    %s106 = sphi 0, %s92
    %s110 = sphi 0, %s110
    %s112 = sphi 0, %s110
    %s113 = sphi 0, %s112
    %s127 = sphi 0, %s113
    %s131 = sphi 0, %s131
    %s133 = sphi 0, %s131
    %s134 = sphi 0, %s133
    %s148 = sphi 0, %s134
    %s152 = sphi 0, %s152
    %s154 = sphi 0, %s152
    %s155 = sphi 0, %s154
    %s169 = sphi 0, %s155
    %s175 = sphi 0, %s177
    %s178 = sphi 0, %s175
    %s179 = sphi 0, %s178
    %s195 = sphi 0, %s179
  $region4: #{cnn_forward.1} parent=0 // loop_header_branch
    %16 = sbr.rel (%p14) target = $region8
  $region5: #{cnn_forward.1} parent=0 // loop_body
    %s18 = ssub.s32 %s13, 1
    %s19 = ssub.s32 %s13, 2
    %s20 = sadd.s32 %s13, 1
    %s21 = ssub.s32 %s13, %s20
    %p22 = scmp.eq.s32.totalorder %s21, 0
    %s24 = sadd.s32 %s23, 1
    %s25 = scalar_select %p22, %s23, %s24
    %p28 = pneg %p22
    %p29 = scmp.eq.s32.totalorder %s13, 1
    %p30 = por %p28, %p29
    %p31 = scmp.ne.s32.totalorder %s23, %s26
    %p32 = scmp.eq.s32.totalorder %s13, 0
    %p33 = por %p31, %p32
    %p34 = scmp.ne.s32.totalorder %s23, %s26
    %p35 = scmp.eq.s32.totalorder %s18, 1
    %p36 = por %p34, %p35
    %p37 = scmp.ne.s32.totalorder %s26, %s27
    %p38 = scmp.eq.s32.totalorder %s18, 0
    %p39 = por %p37, %p38
    %p40 = scmp.ne.s32.totalorder %s26, %s27
    %p41 = scmp.eq.s32.totalorder %s19, 1
    %p42 = por %p40, %p41
    %p44 = scmp.ne.s32.totalorder %s27, %s43
    %p45 = scmp.eq.s32.totalorder %s19, 0
    %p46 = por %p44, %p45
    %s48 = sadd.s32 %s47, 1
    %p51 = scmp.eq.s32.totalorder %s13, 1
    %p52 = scmp.ne.s32.totalorder %s47, %s49
    %p53 = scmp.eq.s32.totalorder %s13, 0
    %p54 = por %p52, %p53
    %p55 = scmp.ne.s32.totalorder %s47, %s49
    %p56 = scmp.eq.s32.totalorder %s18, 1
    %p57 = por %p55, %p56
    %p58 = scmp.ne.s32.totalorder %s49, %s50
    %p59 = scmp.eq.s32.totalorder %s18, 0
    %p60 = por %p58, %p59
    %p61 = scmp.ne.s32.totalorder %s49, %s50
    %p62 = scmp.eq.s32.totalorder %s19, 1
    %p63 = por %p61, %p62
    %p65 = scmp.ne.s32.totalorder %s50, %s64
    %p66 = scmp.eq.s32.totalorder %s19, 0
    %p67 = por %p65, %p66
    %s69 = sadd.s32 %s68, 1
    %p72 = scmp.eq.s32.totalorder %s13, 1
    %p73 = scmp.ne.s32.totalorder %s68, %s70
    %p74 = scmp.eq.s32.totalorder %s13, 0
    %p75 = por %p73, %p74
    %p76 = scmp.ne.s32.totalorder %s68, %s70
    %p77 = scmp.eq.s32.totalorder %s18, 1
    %p78 = por %p76, %p77
    %p79 = scmp.ne.s32.totalorder %s70, %s71
    %p80 = scmp.eq.s32.totalorder %s18, 0
    %p81 = por %p79, %p80
    %p82 = scmp.ne.s32.totalorder %s70, %s71
    %p83 = scmp.eq.s32.totalorder %s19, 1
    %p84 = por %p82, %p83
    %p86 = scmp.ne.s32.totalorder %s71, %s85
    %p87 = scmp.eq.s32.totalorder %s19, 0
    %p88 = por %p86, %p87
    %s90 = sadd.s32 %s89, 1
    %p93 = scmp.eq.s32.totalorder %s13, 1
    %p94 = scmp.ne.s32.totalorder %s89, %s91
    %p95 = scmp.eq.s32.totalorder %s13, 0
    %p96 = por %p94, %p95
    %p97 = scmp.ne.s32.totalorder %s89, %s91
    %p98 = scmp.eq.s32.totalorder %s18, 1
    %p99 = por %p97, %p98
    %p100 = scmp.ne.s32.totalorder %s91, %s92
    %p101 = scmp.eq.s32.totalorder %s18, 0
    %p102 = por %p100, %p101
    %p103 = scmp.ne.s32.totalorder %s91, %s92
    %p104 = scmp.eq.s32.totalorder %s19, 1
    %p105 = por %p103, %p104
    %p107 = scmp.ne.s32.totalorder %s92, %s106
    %p108 = scmp.eq.s32.totalorder %s19, 0
    %p109 = por %p107, %p108
    %s111 = sadd.s32 %s110, 1
    %p114 = scmp.eq.s32.totalorder %s13, 1
    %p115 = scmp.ne.s32.totalorder %s110, %s112
    %p116 = scmp.eq.s32.totalorder %s13, 0
    %p117 = por %p115, %p116
    %p118 = scmp.ne.s32.totalorder %s110, %s112
    %p119 = scmp.eq.s32.totalorder %s18, 1
    %p120 = por %p118, %p119
    %p121 = scmp.ne.s32.totalorder %s112, %s113
    %p122 = scmp.eq.s32.totalorder %s18, 0
    %p123 = por %p121, %p122
    %p124 = scmp.ne.s32.totalorder %s112, %s113
    %p125 = scmp.eq.s32.totalorder %s19, 1
    %p126 = por %p124, %p125
    %p128 = scmp.ne.s32.totalorder %s113, %s127
    %p129 = scmp.eq.s32.totalorder %s19, 0
    %p130 = por %p128, %p129
    %s132 = sadd.s32 %s131, 1
    %p135 = scmp.eq.s32.totalorder %s13, 1
    %p136 = scmp.ne.s32.totalorder %s131, %s133
    %p137 = scmp.eq.s32.totalorder %s13, 0
    %p138 = por %p136, %p137
    %p139 = scmp.ne.s32.totalorder %s131, %s133
    %p140 = scmp.eq.s32.totalorder %s18, 1
    %p141 = por %p139, %p140
    %p142 = scmp.ne.s32.totalorder %s133, %s134
    %p143 = scmp.eq.s32.totalorder %s18, 0
    %p144 = por %p142, %p143
    %p145 = scmp.ne.s32.totalorder %s133, %s134
    %p146 = scmp.eq.s32.totalorder %s19, 1
    %p147 = por %p145, %p146
    %p149 = scmp.ne.s32.totalorder %s134, %s148
    %p150 = scmp.eq.s32.totalorder %s19, 0
    %p151 = por %p149, %p150
    %s153 = sadd.s32 %s152, 1
    %p156 = scmp.eq.s32.totalorder %s13, 1
    %p157 = scmp.ne.s32.totalorder %s152, %s154
    %p158 = scmp.eq.s32.totalorder %s13, 0
    %p159 = por %p157, %p158
    %p160 = scmp.ne.s32.totalorder %s152, %s154
    %p161 = scmp.eq.s32.totalorder %s18, 1
    %p162 = por %p160, %p161
    %p163 = scmp.ne.s32.totalorder %s154, %s155
    %p164 = scmp.eq.s32.totalorder %s18, 0
    %p165 = por %p163, %p164
    %p166 = scmp.ne.s32.totalorder %s154, %s155
    %p167 = scmp.eq.s32.totalorder %s19, 1
    %p168 = por %p166, %p167
    %p170 = scmp.ne.s32.totalorder %s155, %s169
    %p171 = scmp.eq.s32.totalorder %s19, 0
    %p172 = por %p170, %p171
    %s173 = ssub.s32 %s13, %s20
    %p174 = scmp.eq.s32.totalorder %s173, 0
    %s176 = sadd.s32 %s175, 1
    %s177 = scalar_select %p174, %s175, %s176
    %p180 = pneg %p174
    %p181 = scmp.eq.s32.totalorder %s13, 1
    %p182 = por %p180, %p181
    %p183 = scmp.ne.s32.totalorder %s175, %s178
    %p184 = scmp.eq.s32.totalorder %s13, 0
    %p185 = por %p183, %p184
    %p186 = scmp.ne.s32.totalorder %s175, %s178
    %p187 = scmp.eq.s32.totalorder %s18, 1
    %p188 = por %p186, %p187
    %p189 = scmp.ne.s32.totalorder %s178, %s179
    %p190 = scmp.eq.s32.totalorder %s18, 0
    %p191 = por %p189, %p190
    %p192 = scmp.ne.s32.totalorder %s178, %s179
    %p193 = scmp.eq.s32.totalorder %s19, 1
    %p194 = por %p192, %p193
    %p196 = scmp.ne.s32.totalorder %s179, %s195
    %p197 = scmp.eq.s32.totalorder %s19, 0
    %p198 = por %p196, %p197
    %p199 = scmp.le.s32.totalorder 1, %s13
    %p200 = scmp.lt.s32.totalorder %s13, 3
    %p201 = pnand %p199, %p200
    %p202 = pneg %p201
    // Predicated region
    $region9: #{cnn_forward.1} parent=5 // pred_check
      _
    $region10: #{cnn_forward.1} parent=5 // pred_check_branch
      %204 = sbr.rel (%p201) target = $region12
    $region11: #{cnn_forward.1} parent=5 // pred_region
      %s205 = ssub.s32 %s13, 1
      // Predicated region
      $region13: #{cnn_forward.1} parent=11 // pred_check
        %p206 = pneg %p60
      $region14: #{cnn_forward.1} parent=11 // pred_check_branch
        %208 = sbr.rel (%p206) target = $region16
      $region15: #{cnn_forward.1} parent=11 // pred_region
        _
      $region16: #{cnn_forward.1} parent=11 // pred_fallthru
        _
      // Predicated region
      $region17: #{cnn_forward.1} parent=11 // pred_check
        %p209 = pneg %p81
      $region18: #{cnn_forward.1} parent=11 // pred_check_branch
        %211 = sbr.rel (%p209) target = $region20
      $region19: #{cnn_forward.1} parent=11 // pred_region
        _
      $region20: #{cnn_forward.1} parent=11 // pred_fallthru
        _
      // Predicated region
      $region21: #{cnn_forward.1} parent=11 // pred_check
        %p212 = pneg %p102
      $region22: #{cnn_forward.1} parent=11 // pred_check_branch
        %214 = sbr.rel (%p212) target = $region24
      $region23: #{cnn_forward.1} parent=11 // pred_region
        _
      $region24: #{cnn_forward.1} parent=11 // pred_fallthru
        _
      // Predicated region
      $region25: #{cnn_forward.1} parent=11 // pred_check
        %p215 = pneg %p123
      $region26: #{cnn_forward.1} parent=11 // pred_check_branch
        %217 = sbr.rel (%p215) target = $region28
      $region27: #{cnn_forward.1} parent=11 // pred_region
        _
      $region28: #{cnn_forward.1} parent=11 // pred_fallthru
        _
      // Predicated region
      $region29: #{cnn_forward.1} parent=11 // pred_check
        %p218 = pneg %p144
      $region30: #{cnn_forward.1} parent=11 // pred_check_branch
        %220 = sbr.rel (%p218) target = $region32
      $region31: #{cnn_forward.1} parent=11 // pred_region
        _
      $region32: #{cnn_forward.1} parent=11 // pred_fallthru
        _
      // Predicated region
      $region33: #{cnn_forward.1} parent=11 // pred_check
        %p221 = pneg %p165
      $region34: #{cnn_forward.1} parent=11 // pred_check_branch
        %223 = sbr.rel (%p221) target = $region36
      $region35: #{cnn_forward.1} parent=11 // pred_region
        _
      $region36: #{cnn_forward.1} parent=11 // pred_fallthru
        _
    $region12: #{cnn_forward.1} parent=5 // pred_fallthru
      _
    %p224 = scmp.lt.s32.totalorder %s13, 2
    // Predicated region
    $region37: #{cnn_forward.1} parent=5 // pred_check
      %p225 = pneg %p224
    $region38: #{cnn_forward.1} parent=5 // pred_check_branch
      %227 = sbr.rel (%p225) target = $region40
    $region39: #{cnn_forward.1} parent=5 // pred_region
      // Predicated region
      $region41: #{cnn_forward.1} parent=39 // pred_check
        %p228 = pneg %p33
      $region42: #{cnn_forward.1} parent=39 // pred_check_branch
        %230 = sbr.rel (%p228) target = $region44
      $region43: #{cnn_forward.1} parent=39 // pred_region
        %p231 = scmp.lt.s32.totalorder %s13, 1
        %s232 = scalar_select %p231, %s13, 1
        %s233 = smul.addr %s232, 4
        %s234 = scalar_lea.vmem %s0, %s233
      $region44: #{cnn_forward.1} parent=39 // pred_fallthru
        _
    $region40: #{cnn_forward.1} parent=5 // pred_fallthru
      _
    %p235 = scmp.le.s32.totalorder 1, %s13
    %p236 = scmp.lt.s32.totalorder %s13, 3
    %p237 = pnand %p235, %p236
    %p238 = pneg %p237
    // Predicated region
    $region45: #{cnn_forward.1} parent=5 // pred_check
      _
    $region46: #{cnn_forward.1} parent=5 // pred_check_branch
      %240 = sbr.rel (%p237) target = $region48
    $region47: #{cnn_forward.1} parent=5 // pred_region
      %s241 = ssub.s32 %s13, 1
      %p242 = scmp.lt.s32.totalorder %s18, 1
      %s243 = scalar_select %p242, %s18, 1
      %s244 = smul.addr %s243, 4
      %s245 = scalar_lea.vmem %s0, %s244
      %p246 = pneg %p39
      %p247 = pneg %p36
      %p248 = pneg %p60
      %p249 = pneg %p57
      %p250 = pneg %p81
      %p251 = pneg %p78
      %p252 = pneg %p102
      %p253 = pneg %p99
      %p254 = pneg %p123
      %p255 = pneg %p120
      %p256 = pneg %p144
      %p257 = pneg %p141
      %p258 = pneg %p165
      %p259 = pneg %p162
      %p260 = pneg %p191
      %p261 = pneg %p188
      %p262 = scmp.lt.s32.totalorder %s18, 1
      %s263 = scalar_select %p262, %s18, 1
      %s264 = smul.addr %s263, 8
      %s265 = scalar_lea.vmem %s7, %s264
      %p266 = scmp.lt.s32.totalorder %s18, 1
      %s267 = scalar_select %p266, %s18, 1
      %s268 = smul.addr %s267, 4
      %s269 = scalar_lea.vmem %s0, %s268
      %p270 = scmp.lt.s32.totalorder %s18, 1
      %s271 = scalar_select %p270, %s18, 1
      %s272 = smul.addr %s271, 8
      %s273 = scalar_lea.vmem %s7, %s272
      %v275 = vld [vmem:[%s269] sm:$0xf]
      %v276 = vld [vmem:[%s1] sm:$0xf]
      %v277 = vld [vmem:[%s1 + $0x4] sm:$0xf]
      %v278 = vld [vmem:[%s1 + $0x8] sm:$0xf]
      %v279 = vld [vmem:[%s1 + $0xc] sm:$0xf]
      %v280 = vld [vmem:[%s1 + $0x10] sm:$0xf]
      %v281 = vld [vmem:[%s1 + $0x14] sm:$0xf]
      %v282 = vld [vmem:[%s1 + $0x18] sm:$0xf]
      %v283 = vld [vmem:[%s1 + $0x1c] sm:$0xf]
      %v292 = vunpack.c.l.b16 %v276
      %v293 = vunpack.c.l.b16 %v277
      %v294 = vunpack.c.l.b16 %v278
      %v295 = vunpack.c.l.b16 %v279
      %v296 = vunpack.c.l.b16 %v280
      %v297 = vunpack.c.l.b16 %v281
      %v298 = vunpack.c.l.b16 %v282
      %v299 = vunpack.c.l.b16 %v283
      %v300 = vpack.c.b16 %v293, %v292
      %v301 = vpack.c.b16 %v295, %v294
      %v302 = vpack.c.b16 %v297, %v296
      %v303 = vpack.c.b16 %v299, %v298
      %vm308 = vcmask 523264
      %v310 = vsel %vm308, %v275, 0
      %312 = vmatprep.subr.bf16.mxu0 0
      %313 = vmatpush1.bf16.msra.mxu0 %v300
      %314 = vmatprep.subr.bf16.mxu0 0
      %315 = vmatpush1.bf16.msra.mxu0 %v301
      %316 = vmatprep.subr.bf16.mxu0 0
      %317 = vmatpush1.bf16.msra.mxu0 %v302
      %318 = vmatprep.subr.bf16.mxu0 0
      %319 = vmatpush1.bf16.msra.mxu0 %v303
      %320 = vmatprep.subr.bf16.mxu0 0
      %321 = vmatpush1.bf16.msra.mxu0 0
      %322 = vmatprep.subr.bf16.mxu0 0
      %323 = vmatpush1.bf16.msra.mxu0 0
      %324 = vmatprep.subr.bf16.mxu0 0
      %325 = vmatpush1.bf16.msra.mxu0 0
      %326 = vmatprep.subr.bf16.mxu0 0
      %327 = vmatpush1.bf16.msra.mxu0 0
      %328 = vmatprep.subr.bf16.mxu0 0
      %329 = vmatpush1.bf16.msra.mxu0 0
      %330 = vmatprep.subr.bf16.mxu0 0
      %331 = vmatpush1.bf16.msra.mxu0 0
      %332 = vmatprep.subr.bf16.mxu0 0
      %333 = vmatpush1.bf16.msra.mxu0 0
      %334 = vmatprep.subr.bf16.mxu0 0
      %335 = vmatpush1.bf16.msra.mxu0 0
      %336 = vmatprep.subr.bf16.mxu0 0
      %337 = vmatpush1.bf16.msra.mxu0 0
      %338 = vmatprep.subr.bf16.mxu0 0
      %339 = vmatpush1.bf16.msra.mxu0 0
      %340 = vmatprep.subr.bf16.mxu0 0
      %341 = vmatpush1.bf16.msra.mxu0 0
      %342 = vmatprep.subr.bf16.mxu0 0
      %343 = vmatpush1.bf16.msra.mxu0 0
      %344 = vmatprep.mubr.bf16.mxu0 0
      %345 = vmatmul.mubr.bf16.gmra.mrb[0].mxu0 %v310
      %v346 = vpop.f32.mrb[0].mxu0
      %v347 = vadd.f32 0.0, %v346
      %v348 = vpop.f32.mrb[0].mxu0
      %v349 = vpop.f32.mrb[0].mxu0
      %v350 = vpop.f32.mrb[0].mxu0
      %351 = vdwg.mxu0
      %v352 = vld [vmem:[%s2] sm:$0x1]
      %v354 = vlaneseq
      %v355 = vshrl.u32 %v354, 7
      %v356 = vsub.s32 0, %v355
      %v357 = vrot.slane %v352, %v356
      %v359 = vadd.f32 %v347, %v357
      %v360 = vmax.f32 %v359, 0.0
      %361 = vrot.lane.b32.xlu0 %v357, 64
      %v362 = vpop.permute.xlu0 %361
      %v364 = vadd.f32 %v347, %v362
      %v365 = vmax.f32 %v364, 0.0
      %367 = vrot.lane.b32.xlu0 %v365, 64
      %v368 = vpop.permute.xlu0 %367
      %v370 = vmax.f32 %v360, %v368
      %v371 = vpack.c.bf16 %v370, %v370
      %v372 = vld [vmem:[%s3] sm:$0xf]
      %v373 = vld [vmem:[%s3 + $0x4] sm:$0xf]
      %v374 = vld [vmem:[%s3 + $0x8] sm:$0xf]
      %v375 = vld [vmem:[%s3 + $0xc] sm:$0xf]
      %v376 = vld [vmem:[%s3 + $0x10] sm:$0xf]
      %v377 = vld [vmem:[%s3 + $0x14] sm:$0xf]
      %v378 = vld [vmem:[%s3 + $0x18] sm:$0xf]
      %v379 = vld [vmem:[%s3 + $0x1c] sm:$0xf]
      %v380 = vld [vmem:[%s4] sm:$0x1]
      %v382 = vlaneseq
      %v383 = vshrl.u32 %v382, 7
      %v384 = vsub.s32 0, %v383
      %v385 = vrot.slane %v380, %v384
      %v395 = vunpack.c.l.b16 %v372
      %v396 = vunpack.c.l.b16 %v373
      %v397 = vunpack.c.l.b16 %v374
      %v398 = vunpack.c.l.b16 %v375
      %v399 = vunpack.c.l.b16 %v376
      %v400 = vunpack.c.l.b16 %v377
      %v401 = vunpack.c.l.b16 %v378
      %v402 = vunpack.c.l.b16 %v379
      %v403 = vpack.c.b16 %v396, %v395
      %v404 = vpack.c.b16 %v398, %v397
      %v405 = vpack.c.b16 %v400, %v399
      %v406 = vpack.c.b16 %v402, %v401
      %v412 = vsel %vm308, %v371, 0
      %414 = vmatprep.subr.bf16.mxu0 0
      %415 = vmatpush1.bf16.msra.mxu0 %v403
      %416 = vmatprep.subr.bf16.mxu0 0
      %417 = vmatpush1.bf16.msra.mxu0 %v404
      %418 = vmatprep.subr.bf16.mxu0 0
      %419 = vmatpush1.bf16.msra.mxu0 %v405
      %420 = vmatprep.subr.bf16.mxu0 0
      %421 = vmatpush1.bf16.msra.mxu0 %v406
      %422 = vmatprep.subr.bf16.mxu0 0
      %423 = vmatpush1.bf16.msra.mxu0 0
      %424 = vmatprep.subr.bf16.mxu0 0
      %425 = vmatpush1.bf16.msra.mxu0 0
      %426 = vmatprep.subr.bf16.mxu0 0
      %427 = vmatpush1.bf16.msra.mxu0 0
      %428 = vmatprep.subr.bf16.mxu0 0
      %429 = vmatpush1.bf16.msra.mxu0 0
      %430 = vmatprep.subr.bf16.mxu0 0
      %431 = vmatpush1.bf16.msra.mxu0 0
      %432 = vmatprep.subr.bf16.mxu0 0
      %433 = vmatpush1.bf16.msra.mxu0 0
      %434 = vmatprep.subr.bf16.mxu0 0
      %435 = vmatpush1.bf16.msra.mxu0 0
      %436 = vmatprep.subr.bf16.mxu0 0
      %437 = vmatpush1.bf16.msra.mxu0 0
      %438 = vmatprep.subr.bf16.mxu0 0
      %439 = vmatpush1.bf16.msra.mxu0 0
      %440 = vmatprep.subr.bf16.mxu0 0
      %441 = vmatpush1.bf16.msra.mxu0 0
      %442 = vmatprep.subr.bf16.mxu0 0
      %443 = vmatpush1.bf16.msra.mxu0 0
      %444 = vmatprep.subr.bf16.mxu0 0
      %445 = vmatpush1.bf16.msra.mxu0 0
      %446 = vmatprep.mubr.bf16.mxu0 0
      %447 = vmatmul.mubr.bf16.gmra.mrb[0].mxu0 %v412
      %v448 = vpop.f32.mrb[0].mxu0
      %v449 = vadd.f32 %v385, %v448
      %v450 = vpop.f32.mrb[0].mxu0
      %v451 = vpop.f32.mrb[0].mxu0
      %v452 = vpop.f32.mrb[0].mxu0
      %453 = vdwg.mxu0
      %v454 = vmax.f32 %v449, 0.0
      %v455 = vpack.c.bf16 %v454, %v454
      %v456 = vld [vmem:[%s5] sm:$0xf]
      %v457 = vld [vmem:[%s5 + $0x4] sm:$0xf]
      %v458 = vld [vmem:[%s5 + $0x8] sm:$0xf]
      %v459 = vld [vmem:[%s5 + $0xc] sm:$0xf]
      %v460 = vld [vmem:[%s5 + $0x10] sm:$0xf]
      %v461 = vld [vmem:[%s5 + $0x14] sm:$0xf]
      %v462 = vld [vmem:[%s5 + $0x18] sm:$0xf]
      %v463 = vld [vmem:[%s5 + $0x1c] sm:$0xf]
      %v464 = vld [vmem:[%s5 + $0x20] sm:$0xf]
      %v465 = vld [vmem:[%s5 + $0x24] sm:$0xf]
      %v466 = vld [vmem:[%s5 + $0x28] sm:$0xf]
      %v467 = vld [vmem:[%s5 + $0x2c] sm:$0xf]
      %v468 = vld [vmem:[%s5 + $0x30] sm:$0xf]
      %v469 = vld [vmem:[%s5 + $0x34] sm:$0xf]
      %v470 = vld [vmem:[%s5 + $0x38] sm:$0xf]
      %v471 = vld [vmem:[%s5 + $0x3c] sm:$0xf]
      %v472 = vld [vmem:[%s6] sm:$0x1]
      %v474 = vlaneseq
      %v475 = vshrl.u32 %v474, 7
      %v476 = vsub.s32 0, %v475
      %v477 = vrot.slane %v472, %v476
      %v495 = vunpack.c.l.b16 %v456
      %v496 = vunpack.c.l.b16 %v457
      %v497 = vunpack.c.l.b16 %v458
      %v498 = vunpack.c.l.b16 %v459
      %v499 = vunpack.c.l.b16 %v460
      %v500 = vunpack.c.l.b16 %v461
      %v501 = vunpack.c.l.b16 %v462
      %v502 = vunpack.c.l.b16 %v463
      %v503 = vunpack.c.l.b16 %v464
      %v504 = vunpack.c.l.b16 %v465
      %v505 = vunpack.c.l.b16 %v466
      %v506 = vunpack.c.l.b16 %v467
      %v507 = vunpack.c.l.b16 %v468
      %v508 = vunpack.c.l.b16 %v469
      %v509 = vunpack.c.l.b16 %v470
      %v510 = vunpack.c.l.b16 %v471
      %v511 = vpack.c.b16 %v496, %v495
      %v512 = vpack.c.b16 %v498, %v497
      %v513 = vpack.c.b16 %v500, %v499
      %v514 = vpack.c.b16 %v502, %v501
      %v515 = vpack.c.b16 %v504, %v503
      %v516 = vpack.c.b16 %v506, %v505
      %v517 = vpack.c.b16 %v508, %v507
      %v518 = vpack.c.b16 %v510, %v509
      %527 = vmatprep.subr.bf16.mxu0 0
      %528 = vmatpush1.bf16.msra.mxu0 %v511
      %529 = vmatprep.subr.bf16.mxu0 0
      %530 = vmatpush1.bf16.msra.mxu0 %v512
      %531 = vmatprep.subr.bf16.mxu0 0
      %532 = vmatpush1.bf16.msra.mxu0 %v513
      %533 = vmatprep.subr.bf16.mxu0 0
      %534 = vmatpush1.bf16.msra.mxu0 %v514
      %535 = vmatprep.subr.bf16.mxu0 0
      %536 = vmatpush1.bf16.msra.mxu0 %v515
      %537 = vmatprep.subr.bf16.mxu0 0
      %538 = vmatpush1.bf16.msra.mxu0 %v516
      %539 = vmatprep.subr.bf16.mxu0 0
      %540 = vmatpush1.bf16.msra.mxu0 %v517
      %541 = vmatprep.subr.bf16.mxu0 0
      %542 = vmatpush1.bf16.msra.mxu0 %v518
      %543 = vmatprep.subr.bf16.mxu0 0
      %544 = vmatpush1.bf16.msra.mxu0 0
      %545 = vmatprep.subr.bf16.mxu0 0
      %546 = vmatpush1.bf16.msra.mxu0 0
      %547 = vmatprep.subr.bf16.mxu0 0
      %548 = vmatpush1.bf16.msra.mxu0 0
      %549 = vmatprep.subr.bf16.mxu0 0
      %550 = vmatpush1.bf16.msra.mxu0 0
      %551 = vmatprep.subr.bf16.mxu0 0
      %552 = vmatpush1.bf16.msra.mxu0 0
      %553 = vmatprep.subr.bf16.mxu0 0
      %554 = vmatpush1.bf16.msra.mxu0 0
      %555 = vmatprep.subr.bf16.mxu0 0
      %556 = vmatpush1.bf16.msra.mxu0 0
      %557 = vmatprep.subr.bf16.mxu0 0
      %558 = vmatpush1.bf16.msra.mxu0 0
      %559 = vmatprep.mubr.bf16.mxu0 0
      %560 = vmatmul.mubr.bf16.gmra.mrb[0].mxu0 %v455
      %v561 = vpop.f32.mrb[0].mxu0
      %v562 = vadd.f32 %v477, %v561
      %v563 = vpop.f32.mrb[0].mxu0
      %v564 = vpop.f32.mrb[0].mxu0
      %v565 = vpop.f32.mrb[0].mxu0
      %566 = vdwg.mxu0
      %567 = vst [vmem:[%s273] sm:$0xff] %v562
      %p568 = scmp.lt.s32.totalorder %s18, 1
      %s569 = scalar_select %p568, %s18, 1
      %s570 = smul.addr %s569, 8
      %s571 = scalar_lea.vmem %s7, %s570
      // Predicated region
      $region49: #{cnn_forward.1} parent=47 // pred_check
        %p572 = pneg %p188
      $region50: #{cnn_forward.1} parent=47 // pred_check_branch
        %574 = sbr.rel (%p572) target = $region52
      $region51: #{cnn_forward.1} parent=47 // pred_region
        _
      $region52: #{cnn_forward.1} parent=47 // pred_fallthru
        _
    $region48: #{cnn_forward.1} parent=5 // pred_fallthru
      _
    %p575 = scmp.le.s32.totalorder 2, %s13
    // Predicated region
    $region53: #{cnn_forward.1} parent=5 // pred_check
      %p576 = pneg %p575
    $region54: #{cnn_forward.1} parent=5 // pred_check_branch
      %578 = sbr.rel (%p576) target = $region56
    $region55: #{cnn_forward.1} parent=5 // pred_region
      %s579 = ssub.s32 %s13, 2
      // Predicated region
      $region57: #{cnn_forward.1} parent=55 // pred_check
        %p580 = pneg %p194
      $region58: #{cnn_forward.1} parent=55 // pred_check_branch
        %582 = sbr.rel (%p580) target = $region60
      $region59: #{cnn_forward.1} parent=55 // pred_region
        %p583 = scmp.lt.s32.totalorder %s19, 1
        %s584 = scalar_select %p583, %s19, 1
        %s585 = smul.addr %s584, 8
        %s586 = scalar_lea.vmem %s7, %s585
      $region60: #{cnn_forward.1} parent=55 // pred_fallthru
        _
    $region56: #{cnn_forward.1} parent=5 // pred_fallthru
      _
  $region6: #{cnn_forward.1} parent=0 // loop_footer
    %s17 = sadd.s32 1, %s13
  $region7: #{cnn_forward.1} parent=0 // loop_footer_branch
    %12 = sbr.rel target = $region3
  $region8: #{cnn_forward.1} parent=0 // loop_exit
    _

</llo_original>
